<compile_context>
chip_gen: v5e
topology: v5e:2x2
jax: 0.10.0
libtpu: 0.0.40
codegen_flags: <defaults>
</compile_context>

<pallas_src>
import numpy as np
import jax
import jax.numpy as jnp
from jax.experimental import pallas as pl
from jax.experimental.pallas import tpu as pltpu


# -----------------------------------------------------------------------------
# Tile selection (shape-scalable; conservative VMEM budget so it fits v7x).
# -----------------------------------------------------------------------------
def _choose_tiles(B, S, H, itemsize, vmem_budget_bytes=8 * 1024 * 1024):
    # TS is the last dim of the [TB, TS] mask block: must be a multiple of 128
    # or equal to the full S.
    TS = 128 if (S % 128 == 0) else S
    # TB is a sublane dim of the mask/output blocks: multiple of 8 or equal to
    # the full B.  Sized so the double-buffered emb tile stays well within the
    # scoped VMEM limit (v7x default: 32 MiB of 64 MiB physical).
    TB = B
    if B % 8 == 0:
        TB = 8
        for cand in (128, 64, 32, 16, 8):
            if B % cand == 0 and 2 * cand * TS * H * itemsize <= vmem_budget_bytes:
                TB = cand
                break
    return TB, TS


# -----------------------------------------------------------------------------
# Fused kernel: masked mean-pool over S (streamed) + all heads (folded weights).
#   grid = (B//TB, S//TS); S axis is the reduction ("arbitrary") axis.
# -----------------------------------------------------------------------------
def _pooled_heads_kernel(emb_ref, mask_ref, w_ref, b_ref, out_ref,
                         acc_ref, den_ref):
    si = pl.program_id(1)

    @pl.when(si == 0)
    def _init():
        acc_ref[...] = jnp.zeros_like(acc_ref)
        den_ref[...] = jnp.zeros_like(den_ref)

    emb = emb_ref[...].astype(jnp.float32)            # [TB, TS, H]
    m = mask_ref[...].astype(jnp.float32)             # [TB, TS]
    # Streaming accumulation: per-S-tile masked sum into [TB, H] f32 scratch.
    acc_ref[...] += jnp.sum(emb * m[:, :, None], axis=1)          # [TB, H]
    den_ref[...] += jnp.sum(m, axis=1, keepdims=True)             # [TB, 1]

    @pl.when(si == pl.num_programs(1) - 1)
    def _finalize():
        pooled = acc_ref[...] / jnp.maximum(den_ref[...], 1e-9)   # [TB, H]
        out_ref[...] = (jnp.dot(pooled, w_ref[...],
                                preferred_element_type=jnp.float32)
                        + b_ref[...])                             # [TB, C_pad]


def _cls_heads_kernel(emb0_ref, w_ref, b_ref, out_ref):
    pooled = emb0_ref[...].astype(jnp.float32)                    # [TB, H]
    out_ref[...] = (jnp.dot(pooled, w_ref[...],
                            preferred_element_type=jnp.float32)
                    + b_ref[...])                                 # [TB, C_pad]


def fused_readout_heads(emb, mask, w_all, b_all, *, readout="mean"):
    """Returns a lane-dense [B, C_pad] slab containing all head outputs."""
    B, S, H = emb.shape
    C_pad = w_all.shape[1]
    TB, TS = _choose_tiles(B, S, H, jnp.dtype(emb.dtype).itemsize)
    nb = B // TB

    if readout == "cls":
        # Cheap XLA slice of token 0 -> the kernel never streams [B, S, H].
        emb0 = emb[:, 0, :]
        return pl.pallas_call(
            _cls_heads_kernel,
            out_shape=jax.ShapeDtypeStruct((B, C_pad), jnp.float32),
            grid_spec=pltpu.PrefetchScalarGridSpec(
                num_scalar_prefetch=0,
                grid=(nb,),
                in_specs=[
                    pl.BlockSpec((TB, H), lambda bi: (bi, 0)),
                    pl.BlockSpec((H, C_pad), lambda bi: (0, 0)),
                    pl.BlockSpec((1, C_pad), lambda bi: (0, 0)),
                ],
                out_specs=pl.BlockSpec((TB, C_pad), lambda bi: (bi, 0)),
            ),
            compiler_params=pltpu.CompilerParams(
                dimension_semantics=("parallel",)),
        )(emb0, w_all, b_all)

    ns = S // TS
    return pl.pallas_call(
        _pooled_heads_kernel,
        out_shape=jax.ShapeDtypeStruct((B, C_pad), jnp.float32),
        grid_spec=pltpu.PrefetchScalarGridSpec(
            num_scalar_prefetch=0,
            grid=(nb, ns),
            in_specs=[
                pl.BlockSpec((TB, TS, H), lambda bi, si: (bi, si, 0)),
                pl.BlockSpec((TB, TS), lambda bi, si: (bi, si)),
                pl.BlockSpec((H, C_pad), lambda bi, si: (0, 0)),
                pl.BlockSpec((1, C_pad), lambda bi, si: (0, 0)),
            ],
            out_specs=pl.BlockSpec((TB, C_pad), lambda bi, si: (bi, 0)),
            scratch_shapes=[
                pltpu.VMEM((TB, H), jnp.float32),   # masked-sum accumulator
                pltpu.VMEM((TB, 1), jnp.float32),   # mask-count denominator
            ],
        ),
        compiler_params=pltpu.CompilerParams(
            dimension_semantics=("parallel", "arbitrary")),
    )(emb, mask, w_all, b_all)


# -----------------------------------------------------------------------------
# Offline parameter folding: all heads become extra columns of one linear map.
#   head 0:  W0 = ln_w,                 b0 = ln_b
#   head i:  Wi = ln_w @ softmax(M_i),  bi = ln_b @ softmax(M_i)
# Columns are concatenated and padded to a multiple of 128 (lane-dense output).
# -----------------------------------------------------------------------------
def prepare_head_params(params, num_classes):
    ln_w = params["ln_w"]            # [H, C0]
    ln_b = params["ln_b"]            # [1, C0]
    w_list, b_list = [ln_w], [ln_b]
    offsets = [(0, num_classes[0])]
    off = num_classes[0]
    for i in range(1, len(num_classes)):
        sm = jax.nn.softmax(params["label_space_mappings"][i], axis=1)  # [C0, Ci]
        w_list.append(ln_w @ sm)
        b_list.append(ln_b @ sm)
        offsets.append((off, num_classes[i]))
        off += num_classes[i]
    w_all = jnp.concatenate(w_list, axis=1)
    b_all = jnp.concatenate(b_list, axis=1)
    c_total = w_all.shape[1]
    c_pad = max(128, ((c_total + 127) // 128) * 128)
    if c_pad != c_total:
        w_all = jnp.pad(w_all, ((0, 0), (0, c_pad - c_total)))
        b_all = jnp.pad(b_all, ((0, 0), (0, c_pad - c_total)))
    return w_all.astype(jnp.float32), b_all.astype(jnp.float32), tuple(offsets)


# -----------------------------------------------------------------------------
# Wrapper replicating MultiHeadPsuedoLanguageModel.forward (post-backbone).
# -----------------------------------------------------------------------------
def multihead_forward(last_hidden_state, attention_mask, readout_mask,
                      head_indices, prepared, *, readout="mean"):
    """Returns dict {head_index: predictions for examples assigned to that head}."""
    w_all, b_all, offsets = prepared
    mask = readout_mask if readout == "ch" else attention_mask
    slab = fused_readout_heads(last_hidden_state, mask, w_all, b_all,
                               readout=readout)                      # [B, C_pad]
    head_np = np.asarray(head_indices)   # host sync: ragged per-head selection
    final_preds = {}
    for i, (off, width) in enumerate(offsets):
        idx = np.nonzero(head_np == i)[0]
        final_preds[i] = slab[:, off:off + width][
            jnp.asarray(idx, dtype=jnp.int32), :]
    return final_preds


# -----------------------------------------------------------------------------
# Pure-JAX reference for verification (unfolded, matches PyTorch semantics).
# -----------------------------------------------------------------------------
def _reference(last_hidden_state, attention_mask, readout_mask, head_indices,
               params, readout, num_classes):
    if readout == "cls":
        rep = last_hidden_state[:, 0]
    else:
        m = (readout_mask if readout == "ch" else attention_mask)[:, :, None]
        rep = jnp.sum(last_hidden_state * m, axis=1) / jnp.maximum(
            jnp.sum(m, axis=1), 1e-9)
    preds = rep @ params["ln_w"] + params["ln_b"][0]
    head_np = np.asarray(head_indices)
    out = {0: preds[np.nonzero(head_np == 0)[0]]}
    for i in range(1, len(num_classes)):
        sm = jax.nn.softmax(params["label_space_mappings"][i], axis=1)
        out[i] = (preds @ sm)[np.nonzero(head_np == i)[0]]
    return out


if __name__ == "__main__":
    # Small shapes consistent with the module's forward.
    B, S, H = 8, 16, 32
    num_classes = (16, 8)          # [target_num_classes, aux head 1]

    key = jax.random.PRNGKey(0)
    k_emb, k_mask, k_w, k_b, k_map, k_head = jax.random.split(key, 6)

    last_hidden_state = jax.random.normal(k_emb, (B, S, H), dtype=jnp.float32)
    # attention mask: first few tokens valid per example
    lens = np.array([S, S - 2, S - 4, 5, S, 7, 3, S - 1])
    attention_mask = jnp.asarray(
        (np.arange(S)[None, :] < lens[:, None]).astype(np.float32))
    readout_mask = attention_mask  # same shape; used when readout == 'ch'
    head_indices = jnp.asarray(
        jax.random.randint(k_head, (B,), 0, len(num_classes)), dtype=jnp.int32)

    # Deterministic parameter init (shapes from the module __init__).  Linear
    # weight stored as [H, C0] (transpose of nn.Linear's [C0, H]), bias [1, C0].
    params = {
        "ln_w": 0.05 * jax.random.normal(k_w, (H, num_classes[0]), dtype=jnp.float32),
        "ln_b": 0.01 * jax.random.normal(k_b, (1, num_classes[0]), dtype=jnp.float32),
        "label_space_mappings": {
            1: jax.random.normal(k_map, (num_classes[0], num_classes[1]),
                                 dtype=jnp.float32),
        },
    }

    # Fold the constant label-space softmax projections into the linear head
    # once (parameter preprocessing, not per-forward work).
    prepared = prepare_head_params(params, num_classes)

    # Exercise both the streamed mask-pooling path and the cls path.
    for readout in ("mean", "cls"):
        out = multihead_forward(last_hidden_state, attention_mask, readout_mask,
                                head_indices, prepared, readout=readout)
        out = jax.tree_util.tree_map(jax.block_until_ready, out)
        ref = _reference(last_hidden_state, attention_mask, readout_mask,
                         head_indices, params, readout, num_classes)
        for k in out:
            np.testing.assert_allclose(np.asarray(out[k]), np.asarray(ref[k]),
                                       rtol=1e-5, atol=1e-5)
    print("KERNEL_OK")
</pallas_src>

<mosaic_0001>
module attributes {stable_mosaic.version = 11 : i64} {
  func.func @_pooled_heads_kernel(%arg0: i32, %arg1: i32, %arg2: memref<8x16x32xf32, #tpu.memory_space<vmem>>, %arg3: memref<8x16xf32, #tpu.memory_space<vmem>>, %arg4: memref<32x128xf32, #tpu.memory_space<vmem>>, %arg5: memref<1x128xf32, #tpu.memory_space<vmem>>, %arg6: memref<8x128xf32, #tpu.memory_space<vmem>>, %arg7: memref<8x32xf32, #tpu.memory_space<vmem>>, %arg8: memref<8x1xf32, #tpu.memory_space<vmem>>) attributes {dimension_semantics = [#tpu.dimension_semantics<parallel>, #tpu.dimension_semantics<arbitrary>], iteration_bounds = array<i64: 1, 1>, scalar_prefetch = 0 : i64, scratch_operands = 2 : i64, tpu.core_type = #tpu.core_type<tc>, window_params = [{transform_indices = @transform_0, window_bounds = array<i64: 8, 16, 32>}, {transform_indices = @transform_1, window_bounds = array<i64: 8, 16>}, {pipeline_mode = #tpu.pipeline_mode<synchronous>, transform_indices = @transform_2, window_bounds = array<i64: 32, 128>}, {pipeline_mode = #tpu.pipeline_mode<synchronous>, transform_indices = @transform_3, window_bounds = array<i64: 1, 128>}, {transform_indices = @transform_4, window_bounds = array<i64: 8, 128>}]} {
    %c0_i32 = arith.constant 0 : i32
    %0 = arith.cmpi eq, %arg1, %c0_i32 : i32
    %1 = arith.extui %0 : i1 to i32
    %c0_i32_0 = arith.constant 0 : i32
    %2 = arith.cmpi ne, %1, %c0_i32_0 : i32
    scf.if %2 {
      %cst_16 = arith.constant 0.000000e+00 : f32
      %20 = vector.broadcast %cst_16 : f32 to vector<8x32xf32>
      %c0_17 = arith.constant 0 : index
      %c0_18 = arith.constant 0 : index
      %21 = vector.load %arg7[%c0_17, %c0_18] : memref<8x32xf32, #tpu.memory_space<vmem>>, vector<8x32xf32>
      tpu.vector_store %arg7[%c0_17, %c0_18], %20 {strides = array<i32>} : memref<8x32xf32, #tpu.memory_space<vmem>>, vector<8x32xf32>,
      %cst_19 = arith.constant 0.000000e+00 : f32
      %22 = vector.broadcast %cst_19 : f32 to vector<8x1xf32>
      %c0_20 = arith.constant 0 : index
      %c0_21 = arith.constant 0 : index
      %23 = vector.load %arg8[%c0_20, %c0_21] : memref<8x1xf32, #tpu.memory_space<vmem>>, vector<8x1xf32>
      tpu.vector_store %arg8[%c0_20, %c0_21], %22 {strides = array<i32>} : memref<8x1xf32, #tpu.memory_space<vmem>>, vector<8x1xf32>,
    } else {
    }
    %c0 = arith.constant 0 : index
    %c0_1 = arith.constant 0 : index
    %c0_2 = arith.constant 0 : index
    %3 = vector.load %arg2[%c0, %c0_1, %c0_2] : memref<8x16x32xf32, #tpu.memory_space<vmem>>, vector<8x16x32xf32>
    %c0_3 = arith.constant 0 : index
    %c0_4 = arith.constant 0 : index
    %4 = vector.load %arg3[%c0_3, %c0_4] : memref<8x16xf32, #tpu.memory_space<vmem>>, vector<8x16xf32>
    %c0_5 = arith.constant 0 : index
    %c0_6 = arith.constant 0 : index
    %5 = vector.load %arg7[%c0_5, %c0_6] : memref<8x32xf32, #tpu.memory_space<vmem>>, vector<8x32xf32>
    %6 = vector.shape_cast %4 : vector<8x16xf32> to vector<8x16x1xf32>
    %7 = vector.broadcast %6 : vector<8x16x1xf32> to vector<8x16x32xf32>
    %8 = arith.mulf %3, %7 : vector<8x16x32xf32>
    %cst = arith.constant dense<0.000000e+00> : vector<8x32xf32>
    %9 = vector.multi_reduction <add>, %8, %cst [1] : vector<8x16x32xf32> to vector<8x32xf32>
    %10 = arith.addf %5, %9 : vector<8x32xf32>
    %c0_7 = arith.constant 0 : index
    %c0_8 = arith.constant 0 : index
    %11 = vector.load %arg7[%c0_7, %c0_8] : memref<8x32xf32, #tpu.memory_space<vmem>>, vector<8x32xf32>
    tpu.vector_store %arg7[%c0_7, %c0_8], %10 {strides = array<i32>} : memref<8x32xf32, #tpu.memory_space<vmem>>, vector<8x32xf32>,
    %c0_9 = arith.constant 0 : index
    %c0_10 = arith.constant 0 : index
    %12 = vector.load %arg8[%c0_9, %c0_10] : memref<8x1xf32, #tpu.memory_space<vmem>>, vector<8x1xf32>
    %cst_11 = arith.constant dense<0.000000e+00> : vector<8xf32>
    %13 = vector.multi_reduction <add>, %4, %cst_11 [1] : vector<8x16xf32> to vector<8xf32>
    %14 = vector.shape_cast %13 : vector<8xf32> to vector<8x1xf32>
    %15 = arith.addf %12, %14 : vector<8x1xf32>
    %c0_12 = arith.constant 0 : index
    %c0_13 = arith.constant 0 : index
    %16 = vector.load %arg8[%c0_12, %c0_13] : memref<8x1xf32, #tpu.memory_space<vmem>>, vector<8x1xf32>
    tpu.vector_store %arg8[%c0_12, %c0_13], %15 {strides = array<i32>} : memref<8x1xf32, #tpu.memory_space<vmem>>, vector<8x1xf32>,
    %c0_i32_14 = arith.constant 0 : i32
    %17 = arith.cmpi eq, %arg1, %c0_i32_14 : i32
    %18 = arith.extui %17 : i1 to i32
    %c0_i32_15 = arith.constant 0 : i32
    %19 = arith.cmpi ne, %18, %c0_i32_15 : i32
    scf.if %19 {
      %c0_16 = arith.constant 0 : index
      %c0_17 = arith.constant 0 : index
      %20 = vector.load %arg7[%c0_16, %c0_17] : memref<8x32xf32, #tpu.memory_space<vmem>>, vector<8x32xf32>
      %c0_18 = arith.constant 0 : index
      %c0_19 = arith.constant 0 : index
      %21 = vector.load %arg8[%c0_18, %c0_19] : memref<8x1xf32, #tpu.memory_space<vmem>>, vector<8x1xf32>
      %cst_20 = arith.constant 9.99999971E-10 : f32
      %22 = vector.broadcast %cst_20 : f32 to vector<8x1xf32>
      %23 = arith.maximumf %21, %22 : vector<8x1xf32>
      %24 = vector.broadcast %23 : vector<8x1xf32> to vector<8x32xf32>
      %25 = arith.divf %20, %24 : vector<8x32xf32>
      %c0_21 = arith.constant 0 : index
      %c0_22 = arith.constant 0 : index
      %26 = vector.load %arg4[%c0_21, %c0_22] : memref<32x128xf32, #tpu.memory_space<vmem>>, vector<32x128xf32>
      %cst_23 = arith.constant dense<0.000000e+00> : vector<8x128xf32>
      %27 = tpu.matmul %25, %26, %cst_23 {dimension_numbers = #tpu.dot_dimension_numbers<[1], [0], [0], [1], [0, 0, 1, 1], [], []>} : vector<8x32xf32>, vector<32x128xf32>, vector<8x128xf32> -> vector<8x128xf32>
      %c0_24 = arith.constant 0 : index
      %c0_25 = arith.constant 0 : index
      %28 = vector.load %arg5[%c0_24, %c0_25] : memref<1x128xf32, #tpu.memory_space<vmem>>, vector<1x128xf32>
      %29 = vector.broadcast %28 : vector<1x128xf32> to vector<8x128xf32>
      %30 = arith.addf %27, %29 : vector<8x128xf32>
      %c0_26 = arith.constant 0 : index
      %c0_27 = arith.constant 0 : index
      %31 = vector.load %arg6[%c0_26, %c0_27] : memref<8x128xf32, #tpu.memory_space<vmem>>, vector<8x128xf32>
      tpu.vector_store %arg6[%c0_26, %c0_27], %30 {strides = array<i32>} : memref<8x128xf32, #tpu.memory_space<vmem>>, vector<8x128xf32>,
    } else {
    }
    return
  }
  func.func @transform_0(%arg0: i32, %arg1: i32) -> (i32, i32, i32) {
    %c0_i32 = arith.constant 0 : i32
    %c0_i32_0 = arith.constant 0 : i32
    return %arg0, %arg1, %c0_i32 : i32, i32, i32
  }
  func.func @transform_1(%arg0: i32, %arg1: i32) -> (i32, i32) {
    %c0_i32 = arith.constant 0 : i32
    return %arg0, %arg1 : i32, i32
  }
  func.func @transform_2(%arg0: i32, %arg1: i32) -> (i32, i32) {
    %c0_i32 = arith.constant 0 : i32
    %c0_i32_0 = arith.constant 0 : i32
    %c0_i32_1 = arith.constant 0 : i32
    return %c0_i32, %c0_i32_0 : i32, i32
  }
  func.func @transform_3(%arg0: i32, %arg1: i32) -> (i32, i32) {
    %c0_i32 = arith.constant 0 : i32
    %c0_i32_0 = arith.constant 0 : i32
    %c0_i32_1 = arith.constant 0 : i32
    return %c0_i32, %c0_i32_0 : i32, i32
  }
  func.func @transform_4(%arg0: i32, %arg1: i32) -> (i32, i32) {
    %c0_i32 = arith.constant 0 : i32
    %c0_i32_0 = arith.constant 0 : i32
    return %arg0, %c0_i32 : i32, i32
  }
}

</mosaic_0001>

<llo_original>
// kernel: tpu_custom_call.1
$region0: #{tpu_custom_call.1}
  #allocation0 [shape = 'u32[]', space=smem, size = 0x4, offset = 0x4, fixed_abs, tag = 'smem constant byte address 0x4 - core index']
  #allocation1 [shape = 'u32[72,128]{1,0:T(1,128)}', space=vmem, size = 0x9000, scoped, tag = 'internal scratch']
  #allocation2 [shape = 'f32[8,32]{1,0:T(8,128)}', space=vmem, size = 0x1000, scoped, tag = 'scratch operand']
  #allocation3 [shape = 'f32[8,1]{1,0:T(8,128)}', space=vmem, size = 0x1000, scoped, tag = 'scratch operand']
  %s0 = inlined_call_operand.hbm [shape: f32[8,16,32], index: 0, kind: input, shape index: {}]
  %s1 = inlined_call_operand.hbm [shape: f32[8,16], index: 1, kind: input, shape index: {}]
  %s2 = inlined_call_operand.hbm [shape: f32[32,128], index: 2, kind: input, shape index: {}]
  %s3 = inlined_call_operand.vmem [shape: f32[1,128], index: 3, kind: input, shape index: {}]
  %s4 = inlined_call_operand.hbm [shape: f32[8,128], index: 4, kind: output, shape index: {}]
  %s5 = sld [smem:[#allocation0]]
  $region46: #{tpu_custom_call.1} parent=0
    _
  %s7 = ssub.s32 1, %s5
  %s8 = scalar_select 0, %s7, %s5
  $region1: #{tpu_custom_call.1} parent=0
    #allocation4 [shape = 'u8[65536]{0}', space=vmem, size = 0x10000, scoped, tag = 'input window, operand 0, single buffered']
    #allocation5 [shape = 's32[1]{0}', space=sflag, size = 0x4, scoped, tag = 'scoped memory for tpu_custom_call.1']
    #allocation6 [shape = 's32[1]{0}', space=sflag, size = 0x4, scoped, tag = 'scoped memory for tpu_custom_call.1']
    #allocation7 [shape = 'u8[4096]{0}', space=vmem, size = 0x1000, scoped, tag = 'input window, operand 1, single buffered']
    #allocation8 [shape = 's32[1]{0}', space=sflag, size = 0x4, scoped, tag = 'scoped memory for tpu_custom_call.1']
    #allocation9 [shape = 'u8[16384]{0}', space=vmem, size = 0x4000, scoped, tag = 'input window, operand 2, single buffered']
    #allocation10 [shape = 'u8[4096]{0}', space=vmem, size = 0x1000, scoped, tag = 'output window, operand 0, single buffered']
    %9 = vsyncpa [#allocation5], 0
    %10 = vsyncpa [#allocation8], 0
    %11 = vsyncpa [#allocation6], 0
    // Predicated region
    $region2: #{tpu_custom_call.1} parent=1 // pred_check
      _
    $region3: #{tpu_custom_call.1} parent=1 // pred_check_branch
      %13 = sbr.rel (0) target = $region5
    $region4: #{tpu_custom_call.1} parent=1 // pred_region
      %15 = vsyncadd [#allocation5], 0
      %s16 = sshll.u32 %s0, 4
      %s17 = int_to_ptr.hbm [resolvable:$true] %s16
      %s18 = sshll.u32 [#allocation4], 4
      %s19 = int_to_ptr.vmem [resolvable:$true] %s18
      %24 = dma.hbm_to_vmem [thread:$0]  %s17, 2048, %s19, [#allocation5], 128, 128, 8
    $region5: #{tpu_custom_call.1} parent=1 // pred_fallthru
      _
    // Predicated region
    $region6: #{tpu_custom_call.1} parent=1 // pred_check
      _
    $region7: #{tpu_custom_call.1} parent=1 // pred_check_branch
      %26 = sbr.rel (0) target = $region9
    $region8: #{tpu_custom_call.1} parent=1 // pred_region
      %28 = vsyncadd [#allocation8], 0
      %s30 = sshll.u32 %s1, 4
      %s31 = int_to_ptr.hbm [resolvable:$true] %s30
      %s32 = sshll.u32 [#allocation7], 4
      %s33 = int_to_ptr.vmem [resolvable:$true] %s32
      %35 = dma.hbm_to_vmem [thread:$0]  %s31, 128, %s33, [#allocation8]
    $region9: #{tpu_custom_call.1} parent=1 // pred_fallthru
      _
    // Predicated region
    $region10: #{tpu_custom_call.1} parent=1 // pred_check
      _
    $region11: #{tpu_custom_call.1} parent=1 // pred_check_branch
      %37 = sbr.rel (0) target = $region13
    $region12: #{tpu_custom_call.1} parent=1 // pred_region
      %39 = vsyncadd [#allocation8], 0
      %s40 = sshll.u32 %s2, 4
      %s41 = int_to_ptr.hbm [resolvable:$true] %s40
      %s42 = sshll.u32 [#allocation9], 4
      %s43 = int_to_ptr.vmem [resolvable:$true] %s42
      %48 = dma.hbm_to_vmem [thread:$0]  %s41, 512, %s43, [#allocation8], 128, 128, 8
    $region13: #{tpu_custom_call.1} parent=1 // pred_fallthru
      _
    // Predicated region
    $region14: #{tpu_custom_call.1} parent=1 // pred_check
      _
    $region15: #{tpu_custom_call.1} parent=1 // pred_check_branch
      %50 = sbr.rel (0) target = $region17
    $region16: #{tpu_custom_call.1} parent=1 // pred_region
      _
    $region17: #{tpu_custom_call.1} parent=1 // pred_fallthru
      _
    // Predicated region
    $region18: #{tpu_custom_call.1} parent=1 // pred_check
      _
    $region19: #{tpu_custom_call.1} parent=1 // pred_check_branch
      %52 = sbr.rel (0) target = $region21
    $region20: #{tpu_custom_call.1} parent=1 // pred_region
      %54 = dma.done [#allocation5], 2048
    $region21: #{tpu_custom_call.1} parent=1 // pred_fallthru
      _
    // Predicated region
    $region22: #{tpu_custom_call.1} parent=1 // pred_check
      _
    $region23: #{tpu_custom_call.1} parent=1 // pred_check_branch
      %56 = sbr.rel (0) target = $region25
    $region24: #{tpu_custom_call.1} parent=1 // pred_region
      %58 = dma.done [#allocation8], 128
    $region25: #{tpu_custom_call.1} parent=1 // pred_fallthru
      _
    // Predicated region
    $region26: #{tpu_custom_call.1} parent=1 // pred_check
      _
    $region27: #{tpu_custom_call.1} parent=1 // pred_check_branch
      %60 = sbr.rel (0) target = $region29
    $region28: #{tpu_custom_call.1} parent=1 // pred_region
      %62 = dma.done [#allocation8], 512
    $region29: #{tpu_custom_call.1} parent=1 // pred_fallthru
      _
    %p63 = scmp.eq.s32.totalorder 0, 0
    // Predicated region
    $region30: #{tpu_custom_call.1} parent=1 // pred_check
      %p64 = pneg %p63
    $region31: #{tpu_custom_call.1} parent=1 // pred_check_branch
      %66 = sbr.rel (%p64) target = $region33
    $region32: #{tpu_custom_call.1} parent=1 // pred_region
      %vm67 = vcmask 261120
      %68 = vst.msk [vmem:[#allocation2] sm:$0xff] %vm67, 0.0
      %vm69 = vcmask 7168
      %70 = vst.msk [vmem:[#allocation3] sm:$0xff] %vm69, 0.0
    $region33: #{tpu_custom_call.1} parent=1 // pred_fallthru
      _
    %v71 = vld [vmem:[#allocation4] sm:$0xff]
    %v72 = vld [vmem:[#allocation4 + $0x8] sm:$0xff]
    %v73 = vld [vmem:[#allocation4 + $0x10] sm:$0xff]
    %v74 = vld [vmem:[#allocation4 + $0x18] sm:$0xff]
    %v75 = vld [vmem:[#allocation4 + $0x20] sm:$0xff]
    %v76 = vld [vmem:[#allocation4 + $0x28] sm:$0xff]
    %v77 = vld [vmem:[#allocation4 + $0x30] sm:$0xff]
    %v78 = vld [vmem:[#allocation4 + $0x38] sm:$0xff]
    %v79 = vld [vmem:[#allocation4 + $0x40] sm:$0xff]
    %v80 = vld [vmem:[#allocation4 + $0x48] sm:$0xff]
    %v81 = vld [vmem:[#allocation4 + $0x50] sm:$0xff]
    %v82 = vld [vmem:[#allocation4 + $0x58] sm:$0xff]
    %v83 = vld [vmem:[#allocation4 + $0x60] sm:$0xff]
    %v84 = vld [vmem:[#allocation4 + $0x68] sm:$0xff]
    %v85 = vld [vmem:[#allocation4 + $0x70] sm:$0xff]
    %v86 = vld [vmem:[#allocation4 + $0x78] sm:$0xff]
    %v87 = vld [vmem:[#allocation7] sm:$0xff]
    %v88 = vld [vmem:[#allocation2] sm:$0xff]
    %v89 = vperm.slane %v87, 0
    %v90 = vlaneseq
    %v91 = vshrl.u32 %v90, 7
    %93 = vset.pattern.permute.xlu0 %v91
    %94 = vperm.xlu0 %93, %v89
    %v95 = vpop.permute.xlu0 %94
    %v96 = vlaneseq
    %v97 = vshrl.u32 %v96, 7
    %v98 = vadd.s32 %v97, 8
    %99 = vset.pattern.permute.xlu0 %v98
    %100 = vperm.xlu0 %99, %v89
    %v101 = vpop.permute.xlu0 %100
    %v102 = vperm.slane %v87, 1
    %v103 = vlaneseq
    %v104 = vshrl.u32 %v103, 7
    %106 = vset.pattern.permute.xlu0 %v104
    %107 = vperm.xlu0 %106, %v102
    %v108 = vpop.permute.xlu0 %107
    %v109 = vlaneseq
    %v110 = vshrl.u32 %v109, 7
    %v111 = vadd.s32 %v110, 8
    %112 = vset.pattern.permute.xlu0 %v111
    %113 = vperm.xlu0 %112, %v102
    %v114 = vpop.permute.xlu0 %113
    %v115 = vperm.slane %v87, 2
    %v116 = vlaneseq
    %v117 = vshrl.u32 %v116, 7
    %119 = vset.pattern.permute.xlu0 %v117
    %120 = vperm.xlu0 %119, %v115
    %v121 = vpop.permute.xlu0 %120
    %v122 = vlaneseq
    %v123 = vshrl.u32 %v122, 7
    %v124 = vadd.s32 %v123, 8
    %125 = vset.pattern.permute.xlu0 %v124
    %126 = vperm.xlu0 %125, %v115
    %v127 = vpop.permute.xlu0 %126
    %v128 = vperm.slane %v87, 3
    %v129 = vlaneseq
    %v130 = vshrl.u32 %v129, 7
    %132 = vset.pattern.permute.xlu0 %v130
    %133 = vperm.xlu0 %132, %v128
    %v134 = vpop.permute.xlu0 %133
    %v135 = vlaneseq
    %v136 = vshrl.u32 %v135, 7
    %v137 = vadd.s32 %v136, 8
    %138 = vset.pattern.permute.xlu0 %v137
    %139 = vperm.xlu0 %138, %v128
    %v140 = vpop.permute.xlu0 %139
    %v141 = vperm.slane %v87, 4
    %v142 = vlaneseq
    %v143 = vshrl.u32 %v142, 7
    %145 = vset.pattern.permute.xlu0 %v143
    %146 = vperm.xlu0 %145, %v141
    %v147 = vpop.permute.xlu0 %146
    %v148 = vlaneseq
    %v149 = vshrl.u32 %v148, 7
    %v150 = vadd.s32 %v149, 8
    %151 = vset.pattern.permute.xlu0 %v150
    %152 = vperm.xlu0 %151, %v141
    %v153 = vpop.permute.xlu0 %152
    %v154 = vperm.slane %v87, 5
    %v155 = vlaneseq
    %v156 = vshrl.u32 %v155, 7
    %158 = vset.pattern.permute.xlu0 %v156
    %159 = vperm.xlu0 %158, %v154
    %v160 = vpop.permute.xlu0 %159
    %v161 = vlaneseq
    %v162 = vshrl.u32 %v161, 7
    %v163 = vadd.s32 %v162, 8
    %164 = vset.pattern.permute.xlu0 %v163
    %165 = vperm.xlu0 %164, %v154
    %v166 = vpop.permute.xlu0 %165
    %v167 = vperm.slane %v87, 6
    %v168 = vlaneseq
    %v169 = vshrl.u32 %v168, 7
    %171 = vset.pattern.permute.xlu0 %v169
    %172 = vperm.xlu0 %171, %v167
    %v173 = vpop.permute.xlu0 %172
    %v174 = vlaneseq
    %v175 = vshrl.u32 %v174, 7
    %v176 = vadd.s32 %v175, 8
    %177 = vset.pattern.permute.xlu0 %v176
    %178 = vperm.xlu0 %177, %v167
    %v179 = vpop.permute.xlu0 %178
    %v180 = vperm.slane %v87, 7
    %v181 = vlaneseq
    %v182 = vshrl.u32 %v181, 7
    %184 = vset.pattern.permute.xlu0 %v182
    %185 = vperm.xlu0 %184, %v180
    %v186 = vpop.permute.xlu0 %185
    %v187 = vlaneseq
    %v188 = vshrl.u32 %v187, 7
    %v189 = vadd.s32 %v188, 8
    %190 = vset.pattern.permute.xlu0 %v189
    %191 = vperm.xlu0 %190, %v180
    %v192 = vpop.permute.xlu0 %191
    %v193 = vmul.f32 %v71, %v95
    %v194 = vmul.f32 %v72, %v101
    %v195 = vmul.f32 %v73, %v108
    %v196 = vmul.f32 %v74, %v114
    %v197 = vmul.f32 %v75, %v121
    %v198 = vmul.f32 %v76, %v127
    %v199 = vmul.f32 %v77, %v134
    %v200 = vmul.f32 %v78, %v140
    %v201 = vmul.f32 %v79, %v147
    %v202 = vmul.f32 %v80, %v153
    %v203 = vmul.f32 %v81, %v160
    %v204 = vmul.f32 %v82, %v166
    %v205 = vmul.f32 %v83, %v173
    %v206 = vmul.f32 %v84, %v179
    %v207 = vmul.f32 %v85, %v186
    %v208 = vmul.f32 %v86, %v192
    %vm209 = vcmask 261120
    %v210 = vsel %vm209, %v193, 0.0
    %v211 = vsel %vm209, %v194, 0.0
    %v212 = vadd.f32 %v210, %v211
    %v213 = vrot.slane %v212, 4
    %v214 = vadd.f32 %v212, %v213
    %v215 = vrot.slane %v214, 2
    %v216 = vadd.f32 %v214, %v215
    %v217 = vrot.slane %v216, 1
    %v218 = vadd.f32 %v216, %v217
    %v219 = vsel %vm209, %v195, 0.0
    %v220 = vsel %vm209, %v196, 0.0
    %v221 = vadd.f32 %v219, %v220
    %v222 = vrot.slane %v221, 4
    %v223 = vadd.f32 %v221, %v222
    %v224 = vrot.slane %v223, 2
    %v225 = vadd.f32 %v223, %v224
    %v226 = vrot.slane %v225, 1
    %v227 = vadd.f32 %v225, %v226
    %v228 = vsel %vm209, %v197, 0.0
    %v229 = vsel %vm209, %v198, 0.0
    %v230 = vadd.f32 %v228, %v229
    %v231 = vrot.slane %v230, 4
    %v232 = vadd.f32 %v230, %v231
    %v233 = vrot.slane %v232, 2
    %v234 = vadd.f32 %v232, %v233
    %v235 = vrot.slane %v234, 1
    %v236 = vadd.f32 %v234, %v235
    %v237 = vsel %vm209, %v199, 0.0
    %v238 = vsel %vm209, %v200, 0.0
    %v239 = vadd.f32 %v237, %v238
    %v240 = vrot.slane %v239, 4
    %v241 = vadd.f32 %v239, %v240
    %v242 = vrot.slane %v241, 2
    %v243 = vadd.f32 %v241, %v242
    %v244 = vrot.slane %v243, 1
    %v245 = vadd.f32 %v243, %v244
    %v246 = vsel %vm209, %v201, 0.0
    %v247 = vsel %vm209, %v202, 0.0
    %v248 = vadd.f32 %v246, %v247
    %v249 = vrot.slane %v248, 4
    %v250 = vadd.f32 %v248, %v249
    %v251 = vrot.slane %v250, 2
    %v252 = vadd.f32 %v250, %v251
    %v253 = vrot.slane %v252, 1
    %v254 = vadd.f32 %v252, %v253
    %v255 = vsel %vm209, %v203, 0.0
    %v256 = vsel %vm209, %v204, 0.0
    %v257 = vadd.f32 %v255, %v256
    %v258 = vrot.slane %v257, 4
    %v259 = vadd.f32 %v257, %v258
    %v260 = vrot.slane %v259, 2
    %v261 = vadd.f32 %v259, %v260
    %v262 = vrot.slane %v261, 1
    %v263 = vadd.f32 %v261, %v262
    %v264 = vsel %vm209, %v205, 0.0
    %v265 = vsel %vm209, %v206, 0.0
    %v266 = vadd.f32 %v264, %v265
    %v267 = vrot.slane %v266, 4
    %v268 = vadd.f32 %v266, %v267
    %v269 = vrot.slane %v268, 2
    %v270 = vadd.f32 %v268, %v269
    %v271 = vrot.slane %v270, 1
    %v272 = vadd.f32 %v270, %v271
    %v273 = vsel %vm209, %v207, 0.0
    %v274 = vsel %vm209, %v208, 0.0
    %v275 = vadd.f32 %v273, %v274
    %v276 = vrot.slane %v275, 4
    %v277 = vadd.f32 %v275, %v276
    %v278 = vrot.slane %v277, 2
    %v279 = vadd.f32 %v277, %v278
    %v280 = vrot.slane %v279, 1
    %v281 = vadd.f32 %v279, %v280
    %vm290 = vcmask 1041409
    %v291 = vsel %vm290, %v227, %v218
    %vm292 = vcmask 1042434
    %v293 = vsel %vm292, %v236, %v291
    %vm294 = vcmask 1043459
    %v295 = vsel %vm294, %v245, %v293
    %vm296 = vcmask 1044484
    %v297 = vsel %vm296, %v254, %v295
    %vm298 = vcmask 1045509
    %v299 = vsel %vm298, %v263, %v297
    %vm300 = vcmask 1046534
    %v301 = vsel %vm300, %v272, %v299
    %vm302 = vcmask 1047559
    %v303 = vsel %vm302, %v281, %v301
    %v305 = vadd.f32 %v88, %v303
    %306 = vst.msk [vmem:[#allocation2] sm:$0xff] %vm209, %v305
    %v307 = vld [vmem:[#allocation3] sm:$0xff]
    %vm308 = vcmask 130048
    %v309 = vsel %vm308, %v87, 0.0
    %310 = vadd.xlane.f32.xlu0 %v309
    %v311 = vpop.xlane.xlu0 %310
    %v312 = vadd.f32 %v307, %v311
    %vm313 = vcmask 7168
    %314 = vst.msk [vmem:[#allocation3] sm:$0xff] %vm313, %v312
    // Predicated region
    $region34: #{tpu_custom_call.1} parent=1 // pred_check
      %p315 = pneg %p63
    $region35: #{tpu_custom_call.1} parent=1 // pred_check_branch
      %317 = sbr.rel (%p315) target = $region37
    $region36: #{tpu_custom_call.1} parent=1 // pred_region
      %v318 = vld [vmem:[#allocation2] sm:$0xff]
      %v319 = vld [vmem:[#allocation3] sm:$0xff]
      %v320 = vmax.f32 %v319, 1e-09
      %322 = vset.pattern.permute.xlu0 0
      %323 = vperm.xlu0 %322, %v320
      %v324 = vpop.permute.xlu0 %323
      %v326 = vrcp.pop %v324
      %v327 = vmul.f32 %v324, %v326
      %v328 = vsub.f32 1.0, %v327
      %v329 = vmul.f32 %v326, %v328
      %v330 = vadd.f32 %v326, %v329
      %vm331 = vweird.f32 %v324
      %vm332 = vweird.f32 %v326
      %vm333 = vmor %vm331, %vm332
      %v334 = vsel %vm333, %v326, %v330
      %v335 = vand.u32 2147483647, %v324
      %vm336 = vcmp.eq.f32.partialorder %v335, 8.507059e+37
      %v337 = vand.u32 %v324, 2147483648
      %v338 = vor.u32 1.1754944e-38, %v337
      %v339 = vsel %vm336, %v338, %v334
      %v340 = vmul.f32 %v318, %v339
      %v341 = vld [vmem:[#allocation9] sm:$0xff]
      %v342 = vld [vmem:[#allocation9 + $0x8] sm:$0xff]
      %v343 = vld [vmem:[#allocation9 + $0x10] sm:$0xff]
      %v344 = vld [vmem:[#allocation9 + $0x18] sm:$0xff]
      %v345 = vld [vmem:[%s3] sm:$0x1]
      %v347 = vperm.slane %v345, 0
      %v350 = vsel %vm209, %v340, 0
      %352 = vmatpush.msra.mxu0 0.0
      %353 = vmatpush.msra.mxu0 0.0
      %354 = vmatpush.msra.mxu0 0.0
      %355 = vmatpush.msra.mxu0 0.0
      %356 = vmatpush.msra.mxu0 0.0
      %357 = vmatpush.msra.mxu0 0.0
      %358 = vmatpush.msra.mxu0 0.0
      %359 = vmatpush.msra.mxu0 0.0
      %360 = vmatpush.msra.mxu0 0.0
      %361 = vmatpush.msra.mxu0 0.0
      %362 = vmatpush.msra.mxu0 0.0
      %363 = vmatpush.msra.mxu0 0.0
      %364 = vmatpush.msra.mxu0 %v344
      %365 = vmatpush.msra.mxu0 %v343
      %366 = vmatpush.msra.mxu0 %v342
      %367 = vmatpush.msra.mxu0 %v341
      %368 = vmatmul.f32.gmra.mxu0 %v350
      %v369 = vpop.f32.mrf.mxu0
      %v370 = vadd.f32 %v347, %v369
      %371 = vdwg.mxu0
      %372 = vst [vmem:[#allocation10] sm:$0xff] %v370
    $region37: #{tpu_custom_call.1} parent=1 // pred_fallthru
      _
    // Predicated region
    $region38: #{tpu_custom_call.1} parent=1 // pred_check
      _
    $region39: #{tpu_custom_call.1} parent=1 // pred_check_branch
      %374 = sbr.rel (0) target = $region41
    $region40: #{tpu_custom_call.1} parent=1 // pred_region
      %376 = vsyncadd [#allocation6], 0
      %s378 = sshll.u32 [#allocation10], 4
      %s379 = int_to_ptr.vmem [resolvable:$true] %s378
      %s380 = sshll.u32 %s4, 4
      %s381 = int_to_ptr.hbm [resolvable:$true] %s380
      %383 = dma.vmem_to_hbm [thread:$0]  %s379, 128, %s381, [#allocation6]
    $region41: #{tpu_custom_call.1} parent=1 // pred_fallthru
      _
    // Predicated region
    $region42: #{tpu_custom_call.1} parent=1 // pred_check
      _
    $region43: #{tpu_custom_call.1} parent=1 // pred_check_branch
      %385 = sbr.rel (0) target = $region45
    $region44: #{tpu_custom_call.1} parent=1 // pred_region
      %387 = dma.done [#allocation6], 128
    $region45: #{tpu_custom_call.1} parent=1 // pred_fallthru
      _
    %388 = vsyncpa [#allocation5], 1
    %389 = vsyncpa [#allocation8], 1
    %390 = vsyncpa [#allocation6], 1

</llo_original>
